<compile_context>
chip_gen: v7x
topology: tpu7x:2x2x1
jax: 0.10.0
libtpu: 0.0.40
codegen_flags: <defaults>
</compile_context>

<pallas_src>
import jax
import jax.numpy as jnp
from jax.experimental import pallas as pl
from jax.experimental.pallas import tpu as pltpu


LANE = 128          # TPU lane width; output dim padded to this for unmasked stores
SUBLANE = 8
TARGET_TILE = 4 << 20   # aim for ~1-4 MiB of input per grid step


def _round_up(x, m):
    return ((x + m - 1) // m) * m


def _vmem_budget():
    """(per-input-tile budget, scoped-vmem-limit clamp), generation aware."""
    try:
        cap = int(pltpu.get_tpu_info().vmem_capacity_bytes)
    except Exception:                           # no TPU info available
        cap = 128 << 20
    if cap <= (64 << 20):                       # v7x: 64 MiB per TensorCore
        return (6 << 20), (32 << 20)
    return (12 << 20), (64 << 20)               # v5e / v6e: 128 MiB per TC


def _pick_tiles(B, HW, C, itemsize, tile_budget):
    """Pick (tB, B_pad, tHW, HW_pad): per-step input tile ~1-4 MiB, capped by
    the generation VMEM budget; >= 2 batch tiles when B > 8 (v7x megacore)."""
    row_bytes = HW * C * itemsize               # one batch row, all tokens
    soft = min(TARGET_TILE, tile_budget)
    min_tb = B if B <= SUBLANE else SUBLANE

    if min_tb * row_bytes <= tile_budget:
        # --- single-pass fast path: every step sees all tokens of tB rows ---
        tHW, HW_pad = HW, HW
        if B <= SUBLANE:
            tB = B
        else:
            cand = max(min_tb, soft // row_bytes)
            cand = min(cand, tile_budget // row_bytes, B)
            # keep >= 2 batch tiles so v7x's second TensorCore gets work
            cand = min(cand, _round_up((B + 1) // 2, SUBLANE))
            tB = max(SUBLANE, (cand // SUBLANE) * SUBLANE)
        B_pad = _round_up(B, tB)
    else:
        # --- multi-pass: stream token tiles through an f32 accumulator ---
        tB = min_tb
        B_pad = _round_up(B, tB)
        max_thw = max(SUBLANE,
                      (soft // (tB * C * itemsize)) // SUBLANE * SUBLANE)
        tHW = min(max_thw, _round_up(HW, SUBLANE))
        HW_pad = _round_up(HW, tHW)
    return tB, B_pad, tHW, HW_pad


# ---------------------------------------------------------------------------
# Pallas kernels: token-sum + (1/HW-scaled) linear(512 -> 64) + bias
# ---------------------------------------------------------------------------
def pool_linear_onepass_kernel(x_ref, w_ref, b_ref, o_ref):
    # x_ref: (tB, HW, C) bf16 | w_ref: (C, 128) f32 (1/HW folded, lane-padded)
    # b_ref: (1, 128) f32     | o_ref: (tB, 128) f32 (wrapper slices [:, :64])
    # TODO(synk): on v7x only, if a bundle dump shows the VALU slot binding,
    # move this token reduction onto the idle MXU (ones-row contraction);
    # on v5e/v6e the kernel is HBM-read bound so the VPU sum is free.
    s = jnp.sum(x_ref[...].astype(jnp.float32), axis=1)              # (tB, C)
    y = jnp.dot(s, w_ref[...], preferred_element_type=jnp.float32)
    o_ref[...] = (y + b_ref[...]).astype(o_ref.dtype)


def pool_linear_multipass_kernel(x_ref, w_ref, b_ref, o_ref, acc_ref):
    # x_ref: (tB, tHW, C) bf16 token tile; acc_ref: (tB, C) f32 running sum
    k = pl.program_id(1)

    @pl.when(k == 0)
    def _():
        acc_ref[...] = jnp.zeros_like(acc_ref)

    acc_ref[...] += jnp.sum(x_ref[...].astype(jnp.float32), axis=1)

    @pl.when(k == pl.num_programs(1) - 1)
    def _():
        y = jnp.dot(acc_ref[...], w_ref[...],
                    preferred_element_type=jnp.float32)
        o_ref[...] = (y + b_ref[...]).astype(o_ref.dtype)


def global_teacher_head(x_feat, w_torch, b_torch):
    """x_feat: (B, h, w, C) features -> (B, 64).

    AdaptiveAvgPool1d(1) over the h*w tokens + Linear(C, 64), fused into one
    tiled Pallas kernel.  w_torch: (64, C) torch-layout weight; b_torch: (64,).
    """
    B, H, W, C = x_feat.shape
    HW = H * W
    Dout = w_torch.shape[0]
    x_seq = x_feat.reshape(B, HW, C)            # 'b h w c -> b (h w) c'
    itemsize = jnp.dtype(x_seq.dtype).itemsize

    # Trace-time parameter transforms: fold the 1/HW mean scale into the
    # weight, transpose to (C, Dout), zero-pad to 128 lanes so the per-step
    # output store is an unmasked full-lane vst (wrapper slices [:, :64]).
    w_eff = jnp.zeros((C, LANE), jnp.float32).at[:, :Dout].set(
        w_torch.T.astype(jnp.float32) / HW)
    b_eff = jnp.zeros((1, LANE), jnp.float32).at[:, :Dout].set(
        b_torch.astype(jnp.float32))

    tile_budget, limit_clamp = _vmem_budget()
    tB, B_pad, tHW, HW_pad = _pick_tiles(B, HW, C, itemsize, tile_budget)
    nB, nHW = B_pad // tB, HW_pad // tHW

    # Zero-pad ragged batch / token edges.  Zero tokens add nothing to the
    # token sum (1/true-HW is folded into w_eff) and zero batch rows produce
    # bias-only outputs that are sliced away below -> exact, no OOB reads.
    if B_pad != B or HW_pad != HW:
        x_seq = jnp.pad(x_seq, ((0, B_pad - B), (0, HW_pad - HW), (0, 0)))

    # Scoped VMEM: ~2x the true working set + headroom, per-generation clamp.
    working_set = (
        2 * tB * tHW * C * itemsize             # double-buffered input tile
        + C * LANE * 4 + LANE * 4               # weight + bias (Buffered(1))
        + 2 * tB * LANE * 4                     # output tile
        + (tB * C * 4 if nHW > 1 else 0)        # f32 accumulator (multi-pass)
    )
    vmem_limit = int(min(max(2 * working_set + (2 << 20), 4 << 20),
                         limit_clamp))

    if nHW == 1:
        grid_spec = pltpu.PrefetchScalarGridSpec(
            num_scalar_prefetch=0,
            grid=(nB,),
            in_specs=[
                pl.BlockSpec((tB, tHW, C), lambda i: (i, 0, 0)),
                pl.BlockSpec((C, LANE), lambda i: (0, 0),
                             pipeline_mode=pl.Buffered(1)),
                pl.BlockSpec((1, LANE), lambda i: (0, 0),
                             pipeline_mode=pl.Buffered(1)),
            ],
            out_specs=pl.BlockSpec((tB, LANE), lambda i: (i, 0)),
        )
        kernel = pool_linear_onepass_kernel
        dims = ("parallel",)
    else:
        grid_spec = pltpu.PrefetchScalarGridSpec(
            num_scalar_prefetch=0,
            grid=(nB, nHW),
            in_specs=[
                pl.BlockSpec((tB, tHW, C), lambda i, k: (i, k, 0)),
                pl.BlockSpec((C, LANE), lambda i, k: (0, 0),
                             pipeline_mode=pl.Buffered(1)),
                pl.BlockSpec((1, LANE), lambda i, k: (0, 0),
                             pipeline_mode=pl.Buffered(1)),
            ],
            out_specs=pl.BlockSpec((tB, LANE), lambda i, k: (i, 0)),
            scratch_shapes=[pltpu.VMEM((tB, C), jnp.float32)],
        )
        kernel = pool_linear_multipass_kernel
        dims = ("parallel", "arbitrary")

    out_padded = pl.pallas_call(
        kernel,
        out_shape=jax.ShapeDtypeStruct((B_pad, LANE), jnp.float32),
        grid_spec=grid_spec,
        compiler_params=pltpu.CompilerParams(
            dimension_semantics=dims,
            vmem_limit_bytes=vmem_limit,
        ),
    )(x_seq, w_eff, b_eff)
    return out_padded[:B, :Dout]


# ---------------------------------------------------------------------------
# Deterministic synthetic stand-in for the gc_vit_tiny / GlobalBlock encoder.
# ---------------------------------------------------------------------------
def synthetic_encoder(x_nchw, proj):
    # TODO(synk): gc_vit_tiny backbone (GlobalBlock, windowed-attention stages)
    # has no clean single-kernel Pallas equivalent; a deterministic 4x4 patch
    # embedding stands in to produce the (B, h, w, 512) feature map.
    B, Cin, H, W = x_nchw.shape
    p = 4
    h, w = H // p, W // p
    x = x_nchw.reshape(B, Cin, h, p, w, p)
    x = jnp.transpose(x, (0, 2, 4, 1, 3, 5)).reshape(B, h, w, Cin * p * p)
    # Emit bf16 features: halves HBM traffic into the (HBM-read-bound) head
    # kernel; the kernel accumulates in f32.
    return jnp.tanh(x @ proj).astype(jnp.bfloat16)


if __name__ == "__main__":
    key = jax.random.PRNGKey(0)
    k_img, k_proj, k_w, k_b = jax.random.split(key, 4)

    B, Cin, H, W = 2, 3, 32, 32             # small NCHW image input, as in PyTorch
    Cfeat, Dout = 512, 64
    p = 4

    x = jax.random.normal(k_img, (B, Cin, H, W), dtype=jnp.float32)

    # deterministic parameters
    proj = jax.random.normal(k_proj, (Cin * p * p, Cfeat), dtype=jnp.float32) * 0.02
    # torch nn.Linear(512, 64): weight (64, 512), bias (64,)
    w_torch = jax.random.normal(k_w, (Dout, Cfeat), dtype=jnp.float32) * 0.02
    b_torch = jax.random.normal(k_b, (Dout,), dtype=jnp.float32) * 0.02

    # encoder (glue, stand-in) -> (B, 8, 8, 512) bf16 feature map
    x_feat = synthetic_encoder(x, proj)

    # Pallas head: avg-pool over tokens + Linear(512, 64)
    out = global_teacher_head(x_feat, w_torch, b_torch)
    out = jax.block_until_ready(out)

    # reference in plain JAX on the same bf16 features (upcast to f32)
    x32 = x_feat.astype(jnp.float32)
    ref = x32.reshape(B, -1, Cfeat).mean(axis=1) @ w_torch.T + b_torch

    assert out.shape == (B, Dout)
    assert jnp.allclose(out, ref, atol=5e-3, rtol=2e-2), (
        float(jnp.max(jnp.abs(out - ref))))

    print("KERNEL_OK")
</pallas_src>

<mosaic_0001>
module attributes {stable_mosaic.version = 11 : i64} {
  func.func @pool_linear_onepass_kernel(%arg0: i32, %arg1: memref<2x64x512xbf16, #tpu.memory_space<vmem>>, %arg2: memref<512x128xf32, #tpu.memory_space<vmem>>, %arg3: memref<1x128xf32, #tpu.memory_space<vmem>>, %arg4: memref<2x128xf32, #tpu.memory_space<vmem>>) attributes {dimension_semantics = [#tpu.dimension_semantics<parallel>], iteration_bounds = array<i64: 1>, scalar_prefetch = 0 : i64, scratch_operands = 0 : i64, tpu.core_type = #tpu.core_type<tc>, window_params = [{transform_indices = @transform_0, window_bounds = array<i64: 2, 64, 512>}, {pipeline_mode = #tpu.pipeline_mode<synchronous>, transform_indices = @transform_1, window_bounds = array<i64: 512, 128>}, {pipeline_mode = #tpu.pipeline_mode<synchronous>, transform_indices = @transform_2, window_bounds = array<i64: 1, 128>}, {transform_indices = @transform_3, window_bounds = array<i64: 2, 128>}]} {
    %c0 = arith.constant 0 : index
    %c0_0 = arith.constant 0 : index
    %c0_1 = arith.constant 0 : index
    %0 = vector.load %arg1[%c0, %c0_0, %c0_1] : memref<2x64x512xbf16, #tpu.memory_space<vmem>>, vector<2x64x512xbf16>
    %1 = arith.extf %0 : vector<2x64x512xbf16> to vector<2x64x512xf32>
    %cst = arith.constant dense<0.000000e+00> : vector<2x512xf32>
    %2 = vector.multi_reduction <add>, %1, %cst [1] : vector<2x64x512xf32> to vector<2x512xf32>
    %c0_2 = arith.constant 0 : index
    %c0_3 = arith.constant 0 : index
    %3 = vector.load %arg2[%c0_2, %c0_3] : memref<512x128xf32, #tpu.memory_space<vmem>>, vector<512x128xf32>
    %cst_4 = arith.constant dense<0.000000e+00> : vector<2x128xf32>
    %4 = tpu.matmul %2, %3, %cst_4 {dimension_numbers = #tpu.dot_dimension_numbers<[1], [0], [0], [1], [0, 0, 1, 1], [], []>} : vector<2x512xf32>, vector<512x128xf32>, vector<2x128xf32> -> vector<2x128xf32>
    %c0_5 = arith.constant 0 : index
    %c0_6 = arith.constant 0 : index
    %5 = vector.load %arg3[%c0_5, %c0_6] : memref<1x128xf32, #tpu.memory_space<vmem>>, vector<1x128xf32>
    %6 = vector.broadcast %5 : vector<1x128xf32> to vector<2x128xf32>
    %7 = arith.addf %4, %6 : vector<2x128xf32>
    %c0_7 = arith.constant 0 : index
    %c0_8 = arith.constant 0 : index
    %8 = vector.load %arg4[%c0_7, %c0_8] : memref<2x128xf32, #tpu.memory_space<vmem>>, vector<2x128xf32>
    tpu.vector_store %arg4[%c0_7, %c0_8], %7 {strides = array<i32>} : memref<2x128xf32, #tpu.memory_space<vmem>>, vector<2x128xf32>,
    return
  }
  func.func @transform_0(%arg0: i32) -> (i32, i32, i32) {
    %c0_i32 = arith.constant 0 : i32
    %c0_i32_0 = arith.constant 0 : i32
    %c0_i32_1 = arith.constant 0 : i32
    return %arg0, %c0_i32, %c0_i32_0 : i32, i32, i32
  }
  func.func @transform_1(%arg0: i32) -> (i32, i32) {
    %c0_i32 = arith.constant 0 : i32
    %c0_i32_0 = arith.constant 0 : i32
    %c0_i32_1 = arith.constant 0 : i32
    return %c0_i32, %c0_i32_0 : i32, i32
  }
  func.func @transform_2(%arg0: i32) -> (i32, i32) {
    %c0_i32 = arith.constant 0 : i32
    %c0_i32_0 = arith.constant 0 : i32
    %c0_i32_1 = arith.constant 0 : i32
    return %c0_i32, %c0_i32_0 : i32, i32
  }
  func.func @transform_3(%arg0: i32) -> (i32, i32) {
    %c0_i32 = arith.constant 0 : i32
    %c0_i32_0 = arith.constant 0 : i32
    return %arg0, %c0_i32 : i32, i32
  }
}

</mosaic_0001>

<llo_original>
// kernel: tpu_custom_call.1
$region0: #{tpu_custom_call.1}
  #allocation0 [shape = 'u32[]', space=smem, size = 0x4, offset = 0x4, fixed_abs, tag = 'smem constant byte address 0x4 - core index']
  #allocation1 [shape = 'u32[144,128]{1,0:T(1,128)}', space=vmem, size = 0x12000, scoped, tag = 'internal scratch']
  %s0 = inlined_call_operand.hbm [shape: bf16[2,64,512], index: 0, kind: input, shape index: {}]
  %s1 = inlined_call_operand.hbm [shape: f32[512,128], index: 1, kind: input, shape index: {}]
  %s2 = inlined_call_operand.vmem [shape: f32[1,128], index: 2, kind: input, shape index: {}]
  %s3 = inlined_call_operand.hbm [shape: f32[2,128], index: 3, kind: output, shape index: {}]
  %s4 = sld [smem:[#allocation0]]
  $region30: #{tpu_custom_call.1} parent=0
    _
  %s6 = ssub.s32 1, %s4
  %s7 = scalar_select 0, %s6, %s4
  $region1: #{tpu_custom_call.1} parent=0
    #allocation2 [shape = 'u8[131072]{0}', space=vmem, size = 0x20000, scoped, tag = 'input window, operand 0, single buffered']
    #allocation3 [shape = 's32[1]{0}', space=sflag, size = 0x4, scoped, tag = 'scoped memory for tpu_custom_call.1']
    #allocation4 [shape = 's32[1]{0}', space=sflag, size = 0x4, scoped, tag = 'scoped memory for tpu_custom_call.1']
    #allocation5 [shape = 'u8[262144]{0}', space=vmem, size = 0x40000, scoped, tag = 'input window, operand 1, single buffered']
    #allocation6 [shape = 's32[1]{0}', space=sflag, size = 0x4, scoped, tag = 'scoped memory for tpu_custom_call.1']
    #allocation7 [shape = 'u8[1024]{0}', space=vmem, size = 0x400, scoped, tag = 'output window, operand 0, single buffered']
    %8 = vsyncpa [#allocation3], 0
    %9 = vsyncpa [#allocation6], 0
    %10 = vsyncpa [#allocation4], 0
    // Predicated region
    $region2: #{tpu_custom_call.1} parent=1 // pred_check
      _
    $region3: #{tpu_custom_call.1} parent=1 // pred_check_branch
      %12 = sbr.rel (0) target = $region5
    $region4: #{tpu_custom_call.1} parent=1 // pred_region
      %s14 = ssub.s32 4096, 4096
      %15 = vsyncadd [#allocation3], %s14
      %s16 = sshll.u32 [#allocation2], 4
      %s17 = int_to_ptr.vmem [resolvable:$true] %s16
      %22 = dma.hbm_to_vmem [thread:$0]  %s0, 4096, %s17, [#allocation3], 256, 256, 16
    $region5: #{tpu_custom_call.1} parent=1 // pred_fallthru
      _
    // Predicated region
    $region6: #{tpu_custom_call.1} parent=1 // pred_check
      _
    $region7: #{tpu_custom_call.1} parent=1 // pred_check_branch
      %24 = sbr.rel (0) target = $region9
    $region8: #{tpu_custom_call.1} parent=1 // pred_region
      %s26 = ssub.s32 8192, 8192
      %27 = vsyncadd [#allocation6], %s26
      %s28 = sshll.u32 [#allocation5], 4
      %s29 = int_to_ptr.vmem [resolvable:$true] %s28
      %34 = dma.hbm_to_vmem [thread:$0]  %s1, 8192, %s29, [#allocation6], 128, 128, 8
    $region9: #{tpu_custom_call.1} parent=1 // pred_fallthru
      _
    // Predicated region
    $region10: #{tpu_custom_call.1} parent=1 // pred_check
      _
    $region11: #{tpu_custom_call.1} parent=1 // pred_check_branch
      %36 = sbr.rel (0) target = $region13
    $region12: #{tpu_custom_call.1} parent=1 // pred_region
      _
    $region13: #{tpu_custom_call.1} parent=1 // pred_fallthru
      _
    // Predicated region
    $region14: #{tpu_custom_call.1} parent=1 // pred_check
      _
    $region15: #{tpu_custom_call.1} parent=1 // pred_check_branch
      %38 = sbr.rel (0) target = $region17
    $region16: #{tpu_custom_call.1} parent=1 // pred_region
      %39 = dma.done [#allocation3], 4096
    $region17: #{tpu_custom_call.1} parent=1 // pred_fallthru
      _
    // Predicated region
    $region18: #{tpu_custom_call.1} parent=1 // pred_check
      _
    $region19: #{tpu_custom_call.1} parent=1 // pred_check_branch
      %41 = sbr.rel (0) target = $region21
    $region20: #{tpu_custom_call.1} parent=1 // pred_region
      %42 = dma.done [#allocation6], 8192
    $region21: #{tpu_custom_call.1} parent=1 // pred_fallthru
      _
    %v43 = vld [vmem:[#allocation2] sm:$0xff]
    %v44 = vld [vmem:[#allocation2 + $0x8] sm:$0xff]
    %v45 = vld [vmem:[#allocation2 + $0x10] sm:$0xff]
    %v46 = vld [vmem:[#allocation2 + $0x18] sm:$0xff]
    %v47 = vld [vmem:[#allocation2 + $0x20] sm:$0xff]
    %v48 = vld [vmem:[#allocation2 + $0x28] sm:$0xff]
    %v49 = vld [vmem:[#allocation2 + $0x30] sm:$0xff]
    %v50 = vld [vmem:[#allocation2 + $0x38] sm:$0xff]
    %v51 = vld [vmem:[#allocation2 + $0x40] sm:$0xff]
    %v52 = vld [vmem:[#allocation2 + $0x48] sm:$0xff]
    %v53 = vld [vmem:[#allocation2 + $0x50] sm:$0xff]
    %v54 = vld [vmem:[#allocation2 + $0x58] sm:$0xff]
    %v55 = vld [vmem:[#allocation2 + $0x60] sm:$0xff]
    %v56 = vld [vmem:[#allocation2 + $0x68] sm:$0xff]
    %v57 = vld [vmem:[#allocation2 + $0x70] sm:$0xff]
    %v58 = vld [vmem:[#allocation2 + $0x78] sm:$0xff]
    %v59 = vld [vmem:[#allocation2 + $0x80] sm:$0xff]
    %v60 = vld [vmem:[#allocation2 + $0x88] sm:$0xff]
    %v61 = vld [vmem:[#allocation2 + $0x90] sm:$0xff]
    %v62 = vld [vmem:[#allocation2 + $0x98] sm:$0xff]
    %v63 = vld [vmem:[#allocation2 + $0xa0] sm:$0xff]
    %v64 = vld [vmem:[#allocation2 + $0xa8] sm:$0xff]
    %v65 = vld [vmem:[#allocation2 + $0xb0] sm:$0xff]
    %v66 = vld [vmem:[#allocation2 + $0xb8] sm:$0xff]
    %v67 = vld [vmem:[#allocation2 + $0xc0] sm:$0xff]
    %v68 = vld [vmem:[#allocation2 + $0xc8] sm:$0xff]
    %v69 = vld [vmem:[#allocation2 + $0xd0] sm:$0xff]
    %v70 = vld [vmem:[#allocation2 + $0xd8] sm:$0xff]
    %v71 = vld [vmem:[#allocation2 + $0xe0] sm:$0xff]
    %v72 = vld [vmem:[#allocation2 + $0xe8] sm:$0xff]
    %v73 = vld [vmem:[#allocation2 + $0xf0] sm:$0xff]
    %v74 = vld [vmem:[#allocation2 + $0xf8] sm:$0xff]
    %v75 = vunpack.c.l.bf16 %v43
    %v76 = vunpack.c.h.bf16 %v43
    %v77 = vunpack.c.l.bf16 %v44
    %v78 = vunpack.c.h.bf16 %v44
    %v79 = vunpack.c.l.bf16 %v45
    %v80 = vunpack.c.h.bf16 %v45
    %v81 = vunpack.c.l.bf16 %v46
    %v82 = vunpack.c.h.bf16 %v46
    %v83 = vunpack.c.l.bf16 %v47
    %v84 = vunpack.c.h.bf16 %v47
    %v85 = vunpack.c.l.bf16 %v48
    %v86 = vunpack.c.h.bf16 %v48
    %v87 = vunpack.c.l.bf16 %v49
    %v88 = vunpack.c.h.bf16 %v49
    %v89 = vunpack.c.l.bf16 %v50
    %v90 = vunpack.c.h.bf16 %v50
    %v91 = vunpack.c.l.bf16 %v51
    %v92 = vunpack.c.h.bf16 %v51
    %v93 = vunpack.c.l.bf16 %v52
    %v94 = vunpack.c.h.bf16 %v52
    %v95 = vunpack.c.l.bf16 %v53
    %v96 = vunpack.c.h.bf16 %v53
    %v97 = vunpack.c.l.bf16 %v54
    %v98 = vunpack.c.h.bf16 %v54
    %v99 = vunpack.c.l.bf16 %v55
    %v100 = vunpack.c.h.bf16 %v55
    %v101 = vunpack.c.l.bf16 %v56
    %v102 = vunpack.c.h.bf16 %v56
    %v103 = vunpack.c.l.bf16 %v57
    %v104 = vunpack.c.h.bf16 %v57
    %v105 = vunpack.c.l.bf16 %v58
    %v106 = vunpack.c.h.bf16 %v58
    %v107 = vunpack.c.l.bf16 %v59
    %v108 = vunpack.c.h.bf16 %v59
    %v109 = vunpack.c.l.bf16 %v60
    %v110 = vunpack.c.h.bf16 %v60
    %v111 = vunpack.c.l.bf16 %v61
    %v112 = vunpack.c.h.bf16 %v61
    %v113 = vunpack.c.l.bf16 %v62
    %v114 = vunpack.c.h.bf16 %v62
    %v115 = vunpack.c.l.bf16 %v63
    %v116 = vunpack.c.h.bf16 %v63
    %v117 = vunpack.c.l.bf16 %v64
    %v118 = vunpack.c.h.bf16 %v64
    %v119 = vunpack.c.l.bf16 %v65
    %v120 = vunpack.c.h.bf16 %v65
    %v121 = vunpack.c.l.bf16 %v66
    %v122 = vunpack.c.h.bf16 %v66
    %v123 = vunpack.c.l.bf16 %v67
    %v124 = vunpack.c.h.bf16 %v67
    %v125 = vunpack.c.l.bf16 %v68
    %v126 = vunpack.c.h.bf16 %v68
    %v127 = vunpack.c.l.bf16 %v69
    %v128 = vunpack.c.h.bf16 %v69
    %v129 = vunpack.c.l.bf16 %v70
    %v130 = vunpack.c.h.bf16 %v70
    %v131 = vunpack.c.l.bf16 %v71
    %v132 = vunpack.c.h.bf16 %v71
    %v133 = vunpack.c.l.bf16 %v72
    %v134 = vunpack.c.h.bf16 %v72
    %v135 = vunpack.c.l.bf16 %v73
    %v136 = vunpack.c.h.bf16 %v73
    %v137 = vunpack.c.l.bf16 %v74
    %v138 = vunpack.c.h.bf16 %v74
    %v139 = vadd.f32 %v75, %v79
    %v140 = vadd.f32 %v139, %v83
    %v141 = vadd.f32 %v140, %v87
    %v142 = vadd.f32 %v141, %v91
    %v143 = vadd.f32 %v142, %v95
    %v144 = vadd.f32 %v143, %v99
    %v145 = vadd.f32 %v144, %v103
    %v146 = vrot.slane %v145, 4
    %v147 = vadd.f32 %v145, %v146
    %v148 = vrot.slane %v147, 2
    %v149 = vadd.f32 %v147, %v148
    %v150 = vrot.slane %v149, 1
    %v151 = vadd.f32 %v149, %v150
    %v152 = vadd.f32 %v76, %v80
    %v153 = vadd.f32 %v152, %v84
    %v154 = vadd.f32 %v153, %v88
    %v155 = vadd.f32 %v154, %v92
    %v156 = vadd.f32 %v155, %v96
    %v157 = vadd.f32 %v156, %v100
    %v158 = vadd.f32 %v157, %v104
    %v159 = vrot.slane %v158, 4
    %v160 = vadd.f32 %v158, %v159
    %v161 = vrot.slane %v160, 2
    %v162 = vadd.f32 %v160, %v161
    %v163 = vrot.slane %v162, 1
    %v164 = vadd.f32 %v162, %v163
    %v165 = vadd.f32 %v77, %v81
    %v166 = vadd.f32 %v165, %v85
    %v167 = vadd.f32 %v166, %v89
    %v168 = vadd.f32 %v167, %v93
    %v169 = vadd.f32 %v168, %v97
    %v170 = vadd.f32 %v169, %v101
    %v171 = vadd.f32 %v170, %v105
    %v172 = vrot.slane %v171, 4
    %v173 = vadd.f32 %v171, %v172
    %v174 = vrot.slane %v173, 2
    %v175 = vadd.f32 %v173, %v174
    %v176 = vrot.slane %v175, 1
    %v177 = vadd.f32 %v175, %v176
    %v178 = vadd.f32 %v78, %v82
    %v179 = vadd.f32 %v178, %v86
    %v180 = vadd.f32 %v179, %v90
    %v181 = vadd.f32 %v180, %v94
    %v182 = vadd.f32 %v181, %v98
    %v183 = vadd.f32 %v182, %v102
    %v184 = vadd.f32 %v183, %v106
    %v185 = vrot.slane %v184, 4
    %v186 = vadd.f32 %v184, %v185
    %v187 = vrot.slane %v186, 2
    %v188 = vadd.f32 %v186, %v187
    %v189 = vrot.slane %v188, 1
    %v190 = vadd.f32 %v188, %v189
    %v191 = vadd.f32 %v107, %v111
    %v192 = vadd.f32 %v191, %v115
    %v193 = vadd.f32 %v192, %v119
    %v194 = vadd.f32 %v193, %v123
    %v195 = vadd.f32 %v194, %v127
    %v196 = vadd.f32 %v195, %v131
    %v197 = vadd.f32 %v196, %v135
    %v198 = vrot.slane %v197, 4
    %v199 = vadd.f32 %v197, %v198
    %v200 = vrot.slane %v199, 2
    %v201 = vadd.f32 %v199, %v200
    %v202 = vrot.slane %v201, 1
    %v203 = vadd.f32 %v201, %v202
    %v204 = vadd.f32 %v108, %v112
    %v205 = vadd.f32 %v204, %v116
    %v206 = vadd.f32 %v205, %v120
    %v207 = vadd.f32 %v206, %v124
    %v208 = vadd.f32 %v207, %v128
    %v209 = vadd.f32 %v208, %v132
    %v210 = vadd.f32 %v209, %v136
    %v211 = vrot.slane %v210, 4
    %v212 = vadd.f32 %v210, %v211
    %v213 = vrot.slane %v212, 2
    %v214 = vadd.f32 %v212, %v213
    %v215 = vrot.slane %v214, 1
    %v216 = vadd.f32 %v214, %v215
    %v217 = vadd.f32 %v109, %v113
    %v218 = vadd.f32 %v217, %v117
    %v219 = vadd.f32 %v218, %v121
    %v220 = vadd.f32 %v219, %v125
    %v221 = vadd.f32 %v220, %v129
    %v222 = vadd.f32 %v221, %v133
    %v223 = vadd.f32 %v222, %v137
    %v224 = vrot.slane %v223, 4
    %v225 = vadd.f32 %v223, %v224
    %v226 = vrot.slane %v225, 2
    %v227 = vadd.f32 %v225, %v226
    %v228 = vrot.slane %v227, 1
    %v229 = vadd.f32 %v227, %v228
    %v230 = vadd.f32 %v110, %v114
    %v231 = vadd.f32 %v230, %v118
    %v232 = vadd.f32 %v231, %v122
    %v233 = vadd.f32 %v232, %v126
    %v234 = vadd.f32 %v233, %v130
    %v235 = vadd.f32 %v234, %v134
    %v236 = vadd.f32 %v235, %v138
    %v237 = vrot.slane %v236, 4
    %v238 = vadd.f32 %v236, %v237
    %v239 = vrot.slane %v238, 2
    %v240 = vadd.f32 %v238, %v239
    %v241 = vrot.slane %v240, 1
    %v242 = vadd.f32 %v240, %v241
    %v243 = vld [vmem:[#allocation5] sm:$0xff]
    %v244 = vld [vmem:[#allocation5 + $0x8] sm:$0xff]
    %v245 = vld [vmem:[#allocation5 + $0x10] sm:$0xff]
    %v246 = vld [vmem:[#allocation5 + $0x18] sm:$0xff]
    %v247 = vld [vmem:[#allocation5 + $0x20] sm:$0xff]
    %v248 = vld [vmem:[#allocation5 + $0x28] sm:$0xff]
    %v249 = vld [vmem:[#allocation5 + $0x30] sm:$0xff]
    %v250 = vld [vmem:[#allocation5 + $0x38] sm:$0xff]
    %v251 = vld [vmem:[#allocation5 + $0x40] sm:$0xff]
    %v252 = vld [vmem:[#allocation5 + $0x48] sm:$0xff]
    %v253 = vld [vmem:[#allocation5 + $0x50] sm:$0xff]
    %v254 = vld [vmem:[#allocation5 + $0x58] sm:$0xff]
    %v255 = vld [vmem:[#allocation5 + $0x60] sm:$0xff]
    %v256 = vld [vmem:[#allocation5 + $0x68] sm:$0xff]
    %v257 = vld [vmem:[#allocation5 + $0x70] sm:$0xff]
    %v258 = vld [vmem:[#allocation5 + $0x78] sm:$0xff]
    %v259 = vld [vmem:[#allocation5 + $0x80] sm:$0xff]
    %v260 = vld [vmem:[#allocation5 + $0x88] sm:$0xff]
    %v261 = vld [vmem:[#allocation5 + $0x90] sm:$0xff]
    %v262 = vld [vmem:[#allocation5 + $0x98] sm:$0xff]
    %v263 = vld [vmem:[#allocation5 + $0xa0] sm:$0xff]
    %v264 = vld [vmem:[#allocation5 + $0xa8] sm:$0xff]
    %v265 = vld [vmem:[#allocation5 + $0xb0] sm:$0xff]
    %v266 = vld [vmem:[#allocation5 + $0xb8] sm:$0xff]
    %v267 = vld [vmem:[#allocation5 + $0xc0] sm:$0xff]
    %v268 = vld [vmem:[#allocation5 + $0xc8] sm:$0xff]
    %v269 = vld [vmem:[#allocation5 + $0xd0] sm:$0xff]
    %v270 = vld [vmem:[#allocation5 + $0xd8] sm:$0xff]
    %v271 = vld [vmem:[#allocation5 + $0xe0] sm:$0xff]
    %v272 = vld [vmem:[#allocation5 + $0xe8] sm:$0xff]
    %v273 = vld [vmem:[#allocation5 + $0xf0] sm:$0xff]
    %v274 = vld [vmem:[#allocation5 + $0xf8] sm:$0xff]
    %v275 = vld [vmem:[#allocation5 + $0x100] sm:$0xff]
    %v276 = vld [vmem:[#allocation5 + $0x108] sm:$0xff]
    %v277 = vld [vmem:[#allocation5 + $0x110] sm:$0xff]
    %v278 = vld [vmem:[#allocation5 + $0x118] sm:$0xff]
    %v279 = vld [vmem:[#allocation5 + $0x120] sm:$0xff]
    %v280 = vld [vmem:[#allocation5 + $0x128] sm:$0xff]
    %v281 = vld [vmem:[#allocation5 + $0x130] sm:$0xff]
    %v282 = vld [vmem:[#allocation5 + $0x138] sm:$0xff]
    %v283 = vld [vmem:[#allocation5 + $0x140] sm:$0xff]
    %v284 = vld [vmem:[#allocation5 + $0x148] sm:$0xff]
    %v285 = vld [vmem:[#allocation5 + $0x150] sm:$0xff]
    %v286 = vld [vmem:[#allocation5 + $0x158] sm:$0xff]
    %v287 = vld [vmem:[#allocation5 + $0x160] sm:$0xff]
    %v288 = vld [vmem:[#allocation5 + $0x168] sm:$0xff]
    %v289 = vld [vmem:[#allocation5 + $0x170] sm:$0xff]
    %v290 = vld [vmem:[#allocation5 + $0x178] sm:$0xff]
    %v291 = vld [vmem:[#allocation5 + $0x180] sm:$0xff]
    %v292 = vld [vmem:[#allocation5 + $0x188] sm:$0xff]
    %v293 = vld [vmem:[#allocation5 + $0x190] sm:$0xff]
    %v294 = vld [vmem:[#allocation5 + $0x198] sm:$0xff]
    %v295 = vld [vmem:[#allocation5 + $0x1a0] sm:$0xff]
    %v296 = vld [vmem:[#allocation5 + $0x1a8] sm:$0xff]
    %v297 = vld [vmem:[#allocation5 + $0x1b0] sm:$0xff]
    %v298 = vld [vmem:[#allocation5 + $0x1b8] sm:$0xff]
    %v299 = vld [vmem:[#allocation5 + $0x1c0] sm:$0xff]
    %v300 = vld [vmem:[#allocation5 + $0x1c8] sm:$0xff]
    %v301 = vld [vmem:[#allocation5 + $0x1d0] sm:$0xff]
    %v302 = vld [vmem:[#allocation5 + $0x1d8] sm:$0xff]
    %v303 = vld [vmem:[#allocation5 + $0x1e0] sm:$0xff]
    %v304 = vld [vmem:[#allocation5 + $0x1e8] sm:$0xff]
    %v305 = vld [vmem:[#allocation5 + $0x1f0] sm:$0xff]
    %v306 = vld [vmem:[#allocation5 + $0x1f8] sm:$0xff]
    %v307 = vld [vmem:[%s2] sm:$0x1]
    %v309 = vlaneseq
    %v310 = vshrl.u32 %v309, 7
    %v311 = vsub.s32 0, %v310
    %v312 = vrot.slane %v307, %v311
    %vm322 = vcmask 1041409
    %v323 = vsel %vm322, %v203, %v151
    %v324 = vsel %vm322, %v216, %v164
    %v325 = vsel %vm322, %v229, %v177
    %v326 = vsel %vm322, %v242, %v190
    %331 = vmatprep.subr.mxu0 0.0
    %332 = vmatpush1.msra.mxu0 %v243
    %333 = vmatprep.subr.mxu0 0.0
    %334 = vmatpush1.msra.mxu0 %v244
    %335 = vmatprep.subr.mxu0 0.0
    %336 = vmatpush1.msra.mxu0 %v245
    %337 = vmatprep.subr.mxu0 0.0
    %338 = vmatpush1.msra.mxu0 %v246
    %339 = vmatprep.subr.mxu0 0.0
    %340 = vmatpush1.msra.mxu0 %v247
    %341 = vmatprep.subr.mxu0 0.0
    %342 = vmatpush1.msra.mxu0 %v248
    %343 = vmatprep.subr.mxu0 0.0
    %344 = vmatpush1.msra.mxu0 %v249
    %345 = vmatprep.subr.mxu0 0.0
    %346 = vmatpush1.msra.mxu0 %v250
    %347 = vmatprep.subr.mxu0 0.0
    %348 = vmatpush1.msra.mxu0 %v251
    %349 = vmatprep.subr.mxu0 0.0
    %350 = vmatpush1.msra.mxu0 %v252
    %351 = vmatprep.subr.mxu0 0.0
    %352 = vmatpush1.msra.mxu0 %v253
    %353 = vmatprep.subr.mxu0 0.0
    %354 = vmatpush1.msra.mxu0 %v254
    %355 = vmatprep.subr.mxu0 0.0
    %356 = vmatpush1.msra.mxu0 %v255
    %357 = vmatprep.subr.mxu0 0.0
    %358 = vmatpush1.msra.mxu0 %v256
    %359 = vmatprep.subr.mxu0 0.0
    %360 = vmatpush1.msra.mxu0 %v257
    %361 = vmatprep.subr.mxu0 0.0
    %362 = vmatpush1.msra.mxu0 %v258
    %363 = vmatprep.subr.mxu0 0.0
    %364 = vmatpush1.msra.mxu0 %v259
    %365 = vmatprep.subr.mxu0 0.0
    %366 = vmatpush1.msra.mxu0 %v260
    %367 = vmatprep.subr.mxu0 0.0
    %368 = vmatpush1.msra.mxu0 %v261
    %369 = vmatprep.subr.mxu0 0.0
    %370 = vmatpush1.msra.mxu0 %v262
    %371 = vmatprep.subr.mxu0 0.0
    %372 = vmatpush1.msra.mxu0 %v263
    %373 = vmatprep.subr.mxu0 0.0
    %374 = vmatpush1.msra.mxu0 %v264
    %375 = vmatprep.subr.mxu0 0.0
    %376 = vmatpush1.msra.mxu0 %v265
    %377 = vmatprep.subr.mxu0 0.0
    %378 = vmatpush1.msra.mxu0 %v266
    %379 = vmatprep.subr.mxu0 0.0
    %380 = vmatpush1.msra.mxu0 %v267
    %381 = vmatprep.subr.mxu0 0.0
    %382 = vmatpush1.msra.mxu0 %v268
    %383 = vmatprep.subr.mxu0 0.0
    %384 = vmatpush1.msra.mxu0 %v269
    %385 = vmatprep.subr.mxu0 0.0
    %386 = vmatpush1.msra.mxu0 %v270
    %387 = vmatprep.subr.mxu0 0.0
    %388 = vmatpush1.msra.mxu0 %v271
    %389 = vmatprep.subr.mxu0 0.0
    %390 = vmatpush1.msra.mxu0 %v272
    %391 = vmatprep.subr.mxu0 0.0
    %392 = vmatpush1.msra.mxu0 %v273
    %393 = vmatprep.subr.mxu0 0.0
    %394 = vmatpush1.msra.mxu0 %v274
    %395 = vmatprep.mubr.f32.mxu0 %v324
    %396 = vmatmul.mubr.f32.gmra.mrb[0].mxu0 %v323
    %v397 = vpop.f32.mrb[0].mxu0
    %v398 = vadd.f32 %v312, %v397
    %v399 = vpop.f32.mrb[0].mxu0
    %400 = vdwg.mxu0
    %401 = vmatprep.subr.mxu0 0.0
    %402 = vmatpush1.msra.mxu0 %v275
    %403 = vmatprep.subr.mxu0 0.0
    %404 = vmatpush1.msra.mxu0 %v276
    %405 = vmatprep.subr.mxu0 0.0
    %406 = vmatpush1.msra.mxu0 %v277
    %407 = vmatprep.subr.mxu0 0.0
    %408 = vmatpush1.msra.mxu0 %v278
    %409 = vmatprep.subr.mxu0 0.0
    %410 = vmatpush1.msra.mxu0 %v279
    %411 = vmatprep.subr.mxu0 0.0
    %412 = vmatpush1.msra.mxu0 %v280
    %413 = vmatprep.subr.mxu0 0.0
    %414 = vmatpush1.msra.mxu0 %v281
    %415 = vmatprep.subr.mxu0 0.0
    %416 = vmatpush1.msra.mxu0 %v282
    %417 = vmatprep.subr.mxu0 0.0
    %418 = vmatpush1.msra.mxu0 %v283
    %419 = vmatprep.subr.mxu0 0.0
    %420 = vmatpush1.msra.mxu0 %v284
    %421 = vmatprep.subr.mxu0 0.0
    %422 = vmatpush1.msra.mxu0 %v285
    %423 = vmatprep.subr.mxu0 0.0
    %424 = vmatpush1.msra.mxu0 %v286
    %425 = vmatprep.subr.mxu0 0.0
    %426 = vmatpush1.msra.mxu0 %v287
    %427 = vmatprep.subr.mxu0 0.0
    %428 = vmatpush1.msra.mxu0 %v288
    %429 = vmatprep.subr.mxu0 0.0
    %430 = vmatpush1.msra.mxu0 %v289
    %431 = vmatprep.subr.mxu0 0.0
    %432 = vmatpush1.msra.mxu0 %v290
    %433 = vmatprep.subr.mxu0 0.0
    %434 = vmatpush1.msra.mxu0 %v291
    %435 = vmatprep.subr.mxu0 0.0
    %436 = vmatpush1.msra.mxu0 %v292
    %437 = vmatprep.subr.mxu0 0.0
    %438 = vmatpush1.msra.mxu0 %v293
    %439 = vmatprep.subr.mxu0 0.0
    %440 = vmatpush1.msra.mxu0 %v294
    %441 = vmatprep.subr.mxu0 0.0
    %442 = vmatpush1.msra.mxu0 %v295
    %443 = vmatprep.subr.mxu0 0.0
    %444 = vmatpush1.msra.mxu0 %v296
    %445 = vmatprep.subr.mxu0 0.0
    %446 = vmatpush1.msra.mxu0 %v297
    %447 = vmatprep.subr.mxu0 0.0
    %448 = vmatpush1.msra.mxu0 %v298
    %449 = vmatprep.subr.mxu0 0.0
    %450 = vmatpush1.msra.mxu0 %v299
    %451 = vmatprep.subr.mxu0 0.0
    %452 = vmatpush1.msra.mxu0 %v300
    %453 = vmatprep.subr.mxu0 0.0
    %454 = vmatpush1.msra.mxu0 %v301
    %455 = vmatprep.subr.mxu0 0.0
    %456 = vmatpush1.msra.mxu0 %v302
    %457 = vmatprep.subr.mxu0 0.0
    %458 = vmatpush1.msra.mxu0 %v303
    %459 = vmatprep.subr.mxu0 0.0
    %460 = vmatpush1.msra.mxu0 %v304
    %461 = vmatprep.subr.mxu0 0.0
    %462 = vmatpush1.msra.mxu0 %v305
    %463 = vmatprep.subr.mxu0 0.0
    %464 = vmatpush1.msra.mxu0 %v306
    %465 = vmatprep.mubr.f32.mxu0 %v326
    %466 = vmatmul.mubr.f32.gmra.mrb[0].mxu0 %v325
    %v467 = vpop.f32.mrb[0].mxu0
    %v468 = vadd.f32 %v398, %v467
    %v469 = vpop.f32.mrb[0].mxu0
    %470 = vdwg.mxu0
    %471 = vst [vmem:[#allocation7] sm:$0x3] %v468
    // Predicated region
    $region22: #{tpu_custom_call.1} parent=1 // pred_check
      _
    $region23: #{tpu_custom_call.1} parent=1 // pred_check_branch
      %473 = sbr.rel (0) target = $region25
    $region24: #{tpu_custom_call.1} parent=1 // pred_region
      %s475 = ssub.s32 32, 32
      %476 = vsyncadd [#allocation4], %s475
      %s478 = sshll.u32 [#allocation7], 4
      %s479 = int_to_ptr.vmem [resolvable:$true] %s478
      %481 = dma.vmem_to_hbm [thread:$0]  %s479, 32, %s3, [#allocation4]
    $region25: #{tpu_custom_call.1} parent=1 // pred_fallthru
      _
    // Predicated region
    $region26: #{tpu_custom_call.1} parent=1 // pred_check
      _
    $region27: #{tpu_custom_call.1} parent=1 // pred_check_branch
      %483 = sbr.rel (0) target = $region29
    $region28: #{tpu_custom_call.1} parent=1 // pred_region
      %484 = dma.done [#allocation4], 32
    $region29: #{tpu_custom_call.1} parent=1 // pred_fallthru
      _
    %485 = vsyncpa [#allocation3], 1
    %486 = vsyncpa [#allocation6], 1
    %487 = vsyncpa [#allocation4], 1

</llo_original>
